<compile_context>
chip_gen: v7x
topology: tpu7x:2x2x1
jax: 0.10.0
libtpu: 0.0.40
codegen_flags: <defaults>
</compile_context>

<pallas_src>
import functools
import math

import jax
import jax.numpy as jnp
from jax import lax
from jax.experimental import pallas as pl
from jax.experimental.pallas import tpu as pltpu

D = 512        # FeedForward dim (caduceus-ps hidden size: 2 * d_model = 512)
H = 2 * 1024   # FeedForward hidden_dim = 2048
LN_EPS = 1e-5
_INV_SQRT2 = 1.0 / math.sqrt(2.0)


# --------------------------------------------------------------------------
# Phase 1: streamed sequence-sum (HBM-bound part)
# --------------------------------------------------------------------------
def _seq_sum_kernel(x_ref, acc_ref, *, ts, tiles_per_split, seq_len, needs_mask):
    p = pl.program_id(0)           # core-parallel split index
    s = pl.program_id(1)           # sequence-tile index within the split

    @pl.when(s == 0)
    def _():
        acc_ref[...] = jnp.zeros_like(acc_ref)

    xf = x_ref[...].astype(jnp.float32)                       # [B, ts, D]
    if needs_mask:
        # Global row indices of this tile (uncapped); out-of-range rows
        # (ragged tail / redundant clamped tiles) contribute zero.
        row_start = (p * tiles_per_split + s) * ts
        row_ids = lax.broadcasted_iota(jnp.int32, (ts, D), 0) + row_start
        xf = jnp.where((row_ids < seq_len)[None, :, :], xf, 0.0)
    acc_ref[...] += jnp.sum(xf, axis=1)[None, :, :]            # [1, B, D]


# --------------------------------------------------------------------------
# Phase 2: one-shot epilogue  (mean -> LN -> FFN -> head)
# --------------------------------------------------------------------------
def _epilogue_kernel(part_ref, w1_ref, b1_ref, w2_ref, b2_ref, wh_ref, bh_ref,
                     out_ref, *, inv_seq_len):
    m = jnp.sum(part_ref[...], axis=0) * inv_seq_len           # [B, D]

    # LayerNorm (affine folded into w1/b1 at prep time)
    mu = jnp.mean(m, axis=-1, keepdims=True)                   # [B, 1]
    var = jnp.mean((m - mu) * (m - mu), axis=-1, keepdims=True)
    xn = (m - mu) * lax.rsqrt(var + LN_EPS)                    # [B, D]

    # Linear(D, H) in bf16 on the MXU, f32 accumulation, exact (erf) GELU
    h = jnp.dot(xn.astype(w1_ref.dtype), w1_ref[...],
                preferred_element_type=jnp.float32) + b1_ref[...]   # [B, H]
    h = 0.5 * h * (1.0 + lax.erf(h * _INV_SQRT2))
    # TODO(synk): Dropout(p=0.2) omitted -- eval-mode identity (inference).

    # Linear(H, D)
    y = jnp.dot(h.astype(w2_ref.dtype), w2_ref[...],
                preferred_element_type=jnp.float32) + b2_ref[...]   # [B, D]

    # head Linear(D, 1) as VPU multiply + lane reduce; bias from SMEM scalar
    o = jnp.sum(y * wh_ref[...], axis=-1, keepdims=True) + bh_ref[0, 0]
    out_ref[...] = o.astype(out_ref.dtype)


# --------------------------------------------------------------------------
# Wrapper
# --------------------------------------------------------------------------
def _vmem_capacity_bytes():
    try:
        return int(pltpu.get_tpu_info().vmem_capacity_bytes)
    except Exception:
        return 64 << 20   # conservative default (v7x per-TensorCore)


def _pick_seq_tile(S, B, itemsize, budget_bytes):
    """Largest seq-tile (rows) whose double-buffered pair fits the budget.
    Multiple of 8 unless the whole sequence fits in a single block."""
    bytes_per_row = 2 * B * D * itemsize           # double-buffered pair
    max_rows = max(8, budget_bytes // bytes_per_row)
    if S <= max_rows:
        return S
    return max(8, (max_rows // 8) * 8)


def mfnet_caduceus_forward(hidden, prep, *, seq_tile=None):
    """hidden: [B, S, D] (stand-in for caduceus last_hidden_state, bf16 or f32).
    prep: prepared parameter tuple from prepare_params()."""
    w1f, b1f, w2, b2, wh, bh = prep
    B, S, d = hidden.shape
    assert d == D, (d, D)
    itemsize = hidden.dtype.itemsize

    # ---- generation-aware tiling / VMEM bookkeeping ------------------------
    vmem_cap = _vmem_capacity_bytes()
    tile_budget = min(vmem_cap // 4, 32 << 20)     # ~32 MiB on 128 MiB parts, ~16 MiB on v7x
    ts = seq_tile if seq_tile is not None else _pick_seq_tile(S, B, itemsize, tile_budget)
    assert ts == S or ts % 8 == 0, ts

    n_blocks = pl.cdiv(S, ts)
    n_splits = 2 if n_blocks >= 2 else 1           # megacore split (v7x: 2 TCs)
    tiles_per_split = pl.cdiv(n_blocks, n_splits)
    needs_mask = (S % ts != 0) or (tiles_per_split * n_splits != n_blocks)

    # Deeper pipelining only when tiles are small and numerous (hide DMA issue
    # latency); default double-buffering otherwise.
    n_buf = 3 if (ts < 256 and tiles_per_split >= 4) else 2

    def hidden_index_map(p, s, _tps=tiles_per_split, _nb=n_blocks):
        # Clamp redundant tiles of the last split onto the last valid block;
        # their rows are masked out in the kernel.
        return (0, jnp.minimum(p * _tps + s, _nb - 1), 0)

    hidden_spec_kwargs = {}
    if n_buf != 2:
        hidden_spec_kwargs["pipeline_mode"] = pl.Buffered(n_buf)
    hidden_spec = pl.BlockSpec((B, ts, D), hidden_index_map, **hidden_spec_kwargs)

    tile_bytes = B * ts * D * itemsize
    needed = n_buf * tile_bytes + 2 * n_splits * B * D * 4 + (2 << 20)
    vmem_limit = int(min(max(needed, 16 << 20), (vmem_cap * 3) // 4))

    cost1 = pl.CostEstimate(
        flops=int(B) * int(S) * D,
        transcendentals=0,
        bytes_accessed=int(hidden.size) * itemsize + n_splits * B * D * 4,
    )

    sum_kernel = functools.partial(
        _seq_sum_kernel, ts=ts, tiles_per_split=tiles_per_split,
        seq_len=S, needs_mask=needs_mask)

    partials = pl.pallas_call(
        sum_kernel,
        out_shape=jax.ShapeDtypeStruct((n_splits, B, D), jnp.float32),
        grid_spec=pltpu.PrefetchScalarGridSpec(
            num_scalar_prefetch=0,
            grid=(n_splits, tiles_per_split),
            in_specs=[hidden_spec],
            out_specs=pl.BlockSpec((1, B, D), lambda p, s: (p, 0, 0)),
        ),
        compiler_params=pltpu.CompilerParams(
            dimension_semantics=("parallel", "arbitrary"),
            vmem_limit_bytes=vmem_limit,
        ),
        cost_estimate=cost1,
    )(hidden)

    # ---- tiny one-shot epilogue (FFN cost is negligible vs streaming) ------
    epi_kernel = functools.partial(_epilogue_kernel, inv_seq_len=1.0 / S)
    cost2 = pl.CostEstimate(
        flops=4 * B * D * H + 4 * B * D,
        transcendentals=B * H,
        bytes_accessed=(n_splits * B * D * 4
                        + int(w1f.size) * 2 + int(w2.size) * 2
                        + (H + 2 * D + 1) * 4 + B * 4),
    )

    return pl.pallas_call(
        epi_kernel,
        out_shape=jax.ShapeDtypeStruct((B, 1), jnp.float32),
        in_specs=[
            pl.BlockSpec(memory_space=pltpu.MemorySpace.VMEM),   # partials
            pl.BlockSpec(memory_space=pltpu.MemorySpace.VMEM),   # w1 (bf16)
            pl.BlockSpec(memory_space=pltpu.MemorySpace.VMEM),   # b1
            pl.BlockSpec(memory_space=pltpu.MemorySpace.VMEM),   # w2 (bf16)
            pl.BlockSpec(memory_space=pltpu.MemorySpace.VMEM),   # b2
            pl.BlockSpec(memory_space=pltpu.MemorySpace.VMEM),   # wh
            pl.BlockSpec(memory_space=pltpu.MemorySpace.SMEM),   # bh (scalar)
        ],
        out_specs=pl.BlockSpec(memory_space=pltpu.MemorySpace.VMEM),
        compiler_params=pltpu.CompilerParams(vmem_limit_bytes=32 << 20),
        cost_estimate=cost2,
    )(partials, w1f, b1f, w2, b2, wh, bh)


# --------------------------------------------------------------------------
# Parameters
# --------------------------------------------------------------------------
def init_params(key):
    """Deterministic synthetic parameters matching the PyTorch module shapes."""
    ks = jax.random.split(key, 6)
    return {
        "ln_gamma": jnp.ones((1, D), jnp.float32),
        "ln_beta": jnp.zeros((1, D), jnp.float32),
        # nn.Linear stores weight as [out, in]; we keep [in, out] for x @ W.
        "w1": jax.random.normal(ks[0], (D, H), jnp.float32) * (1.0 / math.sqrt(D)),
        "b1": jax.random.normal(ks[1], (1, H), jnp.float32) * 0.01,
        "w2": jax.random.normal(ks[2], (H, D), jnp.float32) * (1.0 / math.sqrt(H)),
        "b2": jax.random.normal(ks[3], (1, D), jnp.float32) * 0.01,
        "wh": jax.random.normal(ks[4], (D, 1), jnp.float32) * (1.0 / math.sqrt(D)),
        "bh": jax.random.normal(ks[5], (1, 1), jnp.float32) * 0.01,
    }


def prepare_params(params):
    """Fold LN affine into w1/b1, cast matmul weights to bf16, reshape head."""
    gamma = params["ln_gamma"].reshape(D).astype(jnp.float32)
    beta = params["ln_beta"].reshape(1, D).astype(jnp.float32)
    w1 = params["w1"].astype(jnp.float32)
    b1 = params["b1"].astype(jnp.float32)
    w1f = (gamma[:, None] * w1).astype(jnp.bfloat16)                   # [D, H]
    b1f = (b1 + beta @ w1).astype(jnp.float32)                          # [1, H]
    w2 = params["w2"].astype(jnp.bfloat16)                              # [H, D]
    b2 = params["b2"].astype(jnp.float32)                               # [1, D]
    wh = params["wh"].reshape(1, D).astype(jnp.float32)                 # [1, D]
    bh = params["bh"].astype(jnp.float32)                               # [1, 1]
    return w1f, b1f, w2, b2, wh, bh


# --------------------------------------------------------------------------
# References
# --------------------------------------------------------------------------
def reference_forward_prepared(hidden, prep):
    """Pure-JAX reference matching the kernel's bf16 matmul arithmetic."""
    w1f, b1f, w2, b2, wh, bh = prep
    S = hidden.shape[1]
    m = jnp.sum(hidden.astype(jnp.float32), axis=1) * (1.0 / S)
    mu = jnp.mean(m, axis=-1, keepdims=True)
    var = jnp.mean((m - mu) ** 2, axis=-1, keepdims=True)
    xn = (m - mu) * lax.rsqrt(var + LN_EPS)
    h = jnp.dot(xn.astype(jnp.bfloat16), w1f,
                preferred_element_type=jnp.float32) + b1f
    h = 0.5 * h * (1.0 + lax.erf(h * _INV_SQRT2))
    y = jnp.dot(h.astype(jnp.bfloat16), w2,
                preferred_element_type=jnp.float32) + b2
    return jnp.sum(y * wh, axis=-1, keepdims=True) + bh


def reference_forward_f32(hidden, params):
    """Full-precision reference matching the original PyTorch module."""
    m = jnp.mean(hidden.astype(jnp.float32), axis=1)
    mu = jnp.mean(m, axis=-1, keepdims=True)
    var = jnp.mean((m - mu) ** 2, axis=-1, keepdims=True)
    xn = (m - mu) / jnp.sqrt(var + LN_EPS)
    xn = xn * params["ln_gamma"] + params["ln_beta"]
    h = xn @ params["w1"] + params["b1"]
    h = 0.5 * h * (1.0 + lax.erf(h * _INV_SQRT2))
    y = h @ params["w2"] + params["b2"]
    return y @ params["wh"] + params["bh"]


# --------------------------------------------------------------------------
if __name__ == "__main__":
    key = jax.random.PRNGKey(0)
    k_x, k_x2, k_p = jax.random.split(key, 3)

    params = init_params(k_p)
    prep = prepare_params(params)

    # TODO(synk): Caduceus pretrained backbone + HF tokenizer not reproducible
    # without its checkpoint; synthetic bf16 last_hidden_state stands in.
    B, S = 2, 8
    hidden = jax.random.normal(k_x, (B, S, D), jnp.float32).astype(jnp.bfloat16)

    out = jax.block_until_ready(mfnet_caduceus_forward(hidden, prep))
    ref_b = reference_forward_prepared(hidden, prep)
    ref_f = reference_forward_f32(hidden, params)

    assert out.shape == (B, 1), out.shape
    assert jnp.allclose(out, ref_b, atol=1e-3, rtol=1e-3), (out, ref_b)
    assert jnp.allclose(out, ref_f, atol=5e-2, rtol=5e-2), (out, ref_f)

    # Second case: ragged S with a forced small tile -- exercises the tail
    # mask, the clamped redundant tile, and the 2-way core-parallel reduction
    # path used on v7x.
    S2 = 40
    hidden2 = jax.random.normal(k_x2, (B, S2, D), jnp.float32).astype(jnp.bfloat16)
    out2 = jax.block_until_ready(mfnet_caduceus_forward(hidden2, prep, seq_tile=16))
    ref_b2 = reference_forward_prepared(hidden2, prep)
    assert out2.shape == (B, 1), out2.shape
    assert jnp.allclose(out2, ref_b2, atol=1e-3, rtol=1e-3), (out2, ref_b2)

    print("KERNEL_OK")
</pallas_src>

<mosaic_0001>
module attributes {stable_mosaic.version = 11 : i64} {
  func.func @_seq_sum_kernel(%arg0: i32, %arg1: i32, %arg2: memref<2x8x512xbf16, #tpu.memory_space<vmem>>, %arg3: memref<1x2x512xf32, #tpu.memory_space<vmem>>) attributes {dimension_semantics = [#tpu.dimension_semantics<parallel>, #tpu.dimension_semantics<arbitrary>], iteration_bounds = array<i64: 1, 1>, scalar_prefetch = 0 : i64, scratch_operands = 0 : i64, tpu.core_type = #tpu.core_type<tc>, window_params = [{transform_indices = @transform_0, window_bounds = array<i64: 2, 8, 512>}, {transform_indices = @transform_1, window_bounds = array<i64: 1, 2, 512>}]} {
    %c0_i32 = arith.constant 0 : i32
    %0 = arith.cmpi eq, %arg1, %c0_i32 : i32
    %1 = arith.extui %0 : i1 to i32
    %c0_i32_0 = arith.constant 0 : i32
    %2 = arith.cmpi ne, %1, %c0_i32_0 : i32
    scf.if %2 {
      %cst_9 = arith.constant 0.000000e+00 : f32
      %10 = vector.broadcast %cst_9 : f32 to vector<1x2x512xf32>
      %c0_10 = arith.constant 0 : index
      %c0_11 = arith.constant 0 : index
      %c0_12 = arith.constant 0 : index
      %11 = vector.load %arg3[%c0_10, %c0_11, %c0_12] : memref<1x2x512xf32, #tpu.memory_space<vmem>>, vector<1x2x512xf32>
      tpu.vector_store %arg3[%c0_10, %c0_11, %c0_12], %10 {strides = array<i32>} : memref<1x2x512xf32, #tpu.memory_space<vmem>>, vector<1x2x512xf32>,
    } else {
    }
    %c0 = arith.constant 0 : index
    %c0_1 = arith.constant 0 : index
    %c0_2 = arith.constant 0 : index
    %3 = vector.load %arg2[%c0, %c0_1, %c0_2] : memref<2x8x512xbf16, #tpu.memory_space<vmem>>, vector<2x8x512xbf16>
    %4 = arith.extf %3 : vector<2x8x512xbf16> to vector<2x8x512xf32>
    %c0_3 = arith.constant 0 : index
    %c0_4 = arith.constant 0 : index
    %c0_5 = arith.constant 0 : index
    %5 = vector.load %arg3[%c0_3, %c0_4, %c0_5] : memref<1x2x512xf32, #tpu.memory_space<vmem>>, vector<1x2x512xf32>
    %cst = arith.constant dense<0.000000e+00> : vector<2x512xf32>
    %6 = vector.multi_reduction <add>, %4, %cst [1] : vector<2x8x512xf32> to vector<2x512xf32>
    %7 = vector.shape_cast %6 : vector<2x512xf32> to vector<1x2x512xf32>
    %8 = arith.addf %5, %7 : vector<1x2x512xf32>
    %c0_6 = arith.constant 0 : index
    %c0_7 = arith.constant 0 : index
    %c0_8 = arith.constant 0 : index
    %9 = vector.load %arg3[%c0_6, %c0_7, %c0_8] : memref<1x2x512xf32, #tpu.memory_space<vmem>>, vector<1x2x512xf32>
    tpu.vector_store %arg3[%c0_6, %c0_7, %c0_8], %8 {strides = array<i32>} : memref<1x2x512xf32, #tpu.memory_space<vmem>>, vector<1x2x512xf32>,
    return
  }
  func.func @transform_0(%arg0: i32, %arg1: i32) -> (i32, i32, i32) {
    %c1_i32 = arith.constant 1 : i32
    %0 = arith.muli %arg0, %c1_i32 : i32
    %1 = arith.addi %0, %arg1 : i32
    %c0_i32 = arith.constant 0 : i32
    %2 = arith.minsi %1, %c0_i32 : i32
    %c0_i32_0 = arith.constant 0 : i32
    %c0_i32_1 = arith.constant 0 : i32
    %c0_i32_2 = arith.constant 0 : i32
    return %c0_i32_0, %2, %c0_i32_1 : i32, i32, i32
  }
  func.func @transform_1(%arg0: i32, %arg1: i32) -> (i32, i32, i32) {
    %c0_i32 = arith.constant 0 : i32
    %c0_i32_0 = arith.constant 0 : i32
    %c0_i32_1 = arith.constant 0 : i32
    return %arg0, %c0_i32, %c0_i32_0 : i32, i32, i32
  }
}

</mosaic_0001>

<llo_original>
// kernel: tpu_custom_call.1
$region0: #{tpu_custom_call.1}
  #allocation0 [shape = 'u32[]', space=smem, size = 0x4, offset = 0x4, fixed_abs, tag = 'smem constant byte address 0x4 - core index']
  #allocation1 [shape = 'u32[144,128]{1,0:T(1,128)}', space=vmem, size = 0x12000, scoped, tag = 'internal scratch']
  %s0 = inlined_call_operand.hbm [shape: bf16[2,8,512], index: 0, kind: input, shape index: {}]
  %s1 = inlined_call_operand.hbm [shape: f32[1,2,512], index: 1, kind: output, shape index: {}]
  %s2 = sld [smem:[#allocation0]]
  $region22: #{tpu_custom_call.1} parent=0
    _
  %s4 = ssub.s32 1, %s2
  %s5 = scalar_select 0, %s4, %s2
  $region1: #{tpu_custom_call.1} parent=0
    #allocation2 [shape = 'u8[16384]{0}', space=vmem, size = 0x4000, scoped, tag = 'input window, operand 0, single buffered']
    #allocation3 [shape = 's32[1]{0}', space=sflag, size = 0x4, scoped, tag = 'scoped memory for tpu_custom_call.1']
    #allocation4 [shape = 's32[1]{0}', space=sflag, size = 0x4, scoped, tag = 'scoped memory for tpu_custom_call.1']
    #allocation5 [shape = 'u8[4096]{0}', space=vmem, size = 0x1000, scoped, tag = 'output window, operand 0, single buffered']
    %6 = vsyncpa [#allocation3], 0
    %7 = vsyncpa [#allocation4], 0
    // Predicated region
    $region2: #{tpu_custom_call.1} parent=1 // pred_check
      _
    $region3: #{tpu_custom_call.1} parent=1 // pred_check_branch
      %9 = sbr.rel (0) target = $region5
    $region4: #{tpu_custom_call.1} parent=1 // pred_region
      %s10 = sadd.s32 0, 0
      %p11 = scmp.lt.s32.totalorder %s10, 0
      %s12 = scalar_select %p11, %s10, 0
      %s14 = ssub.s32 512, 512
      %15 = vsyncadd [#allocation3], %s14
      %s16 = smul.addr %s12, 4
      %s17 = smul.addr %s16, 64
      %s18 = scalar_lea.hbm %s0, %s17
      %s19 = sshll.u32 [#allocation2], 4
      %s20 = int_to_ptr.vmem [resolvable:$true] %s19
      %25 = dma.hbm_to_vmem [thread:$0]  %s18, 512, %s20, [#allocation3], 256, 256, 16
    $region5: #{tpu_custom_call.1} parent=1 // pred_fallthru
      _
    // Predicated region
    $region6: #{tpu_custom_call.1} parent=1 // pred_check
      _
    $region7: #{tpu_custom_call.1} parent=1 // pred_check_branch
      %27 = sbr.rel (0) target = $region9
    $region8: #{tpu_custom_call.1} parent=1 // pred_region
      %28 = dma.done [#allocation3], 512
    $region9: #{tpu_custom_call.1} parent=1 // pred_fallthru
      _
    %s29 = sadd.s32 0, 0
    %p30 = scmp.lt.s32.totalorder %s29, 0
    %s31 = scalar_select %p30, %s29, 0
    %p32 = scmp.eq.s32.totalorder 0, 0
    // Predicated region
    $region10: #{tpu_custom_call.1} parent=1 // pred_check
      %p33 = pneg %p32
    $region11: #{tpu_custom_call.1} parent=1 // pred_check_branch
      %35 = sbr.rel (%p33) target = $region13
    $region12: #{tpu_custom_call.1} parent=1 // pred_region
      %36 = vst [vmem:[#allocation5] sm:$0xff] 0.0
    $region13: #{tpu_custom_call.1} parent=1 // pred_fallthru
      _
    %v37 = vld [vmem:[#allocation2] sm:$0xff]
    %v38 = vld [vmem:[#allocation2 + $0x8] sm:$0xff]
    %v39 = vld [vmem:[#allocation2 + $0x10] sm:$0xff]
    %v40 = vld [vmem:[#allocation2 + $0x18] sm:$0xff]
    %v41 = vunpack.c.l.bf16 %v37
    %v42 = vunpack.c.h.bf16 %v37
    %v43 = vunpack.c.l.bf16 %v38
    %v44 = vunpack.c.h.bf16 %v38
    %v45 = vunpack.c.l.bf16 %v39
    %v46 = vunpack.c.h.bf16 %v39
    %v47 = vunpack.c.l.bf16 %v40
    %v48 = vunpack.c.h.bf16 %v40
    %v49 = vld [vmem:[#allocation5] sm:$0xff]
    %v50 = vrot.slane %v41, 4
    %v51 = vadd.f32 %v41, %v50
    %v52 = vrot.slane %v51, 2
    %v53 = vadd.f32 %v51, %v52
    %v54 = vrot.slane %v53, 1
    %v55 = vadd.f32 %v53, %v54
    %v56 = vrot.slane %v42, 4
    %v57 = vadd.f32 %v42, %v56
    %v58 = vrot.slane %v57, 2
    %v59 = vadd.f32 %v57, %v58
    %v60 = vrot.slane %v59, 1
    %v61 = vadd.f32 %v59, %v60
    %v62 = vrot.slane %v43, 4
    %v63 = vadd.f32 %v43, %v62
    %v64 = vrot.slane %v63, 2
    %v65 = vadd.f32 %v63, %v64
    %v66 = vrot.slane %v65, 1
    %v67 = vadd.f32 %v65, %v66
    %v68 = vrot.slane %v44, 4
    %v69 = vadd.f32 %v44, %v68
    %v70 = vrot.slane %v69, 2
    %v71 = vadd.f32 %v69, %v70
    %v72 = vrot.slane %v71, 1
    %v73 = vadd.f32 %v71, %v72
    %v74 = vrot.slane %v45, 4
    %v75 = vadd.f32 %v45, %v74
    %v76 = vrot.slane %v75, 2
    %v77 = vadd.f32 %v75, %v76
    %v78 = vrot.slane %v77, 1
    %v79 = vadd.f32 %v77, %v78
    %v80 = vrot.slane %v46, 4
    %v81 = vadd.f32 %v46, %v80
    %v82 = vrot.slane %v81, 2
    %v83 = vadd.f32 %v81, %v82
    %v84 = vrot.slane %v83, 1
    %v85 = vadd.f32 %v83, %v84
    %v86 = vrot.slane %v47, 4
    %v87 = vadd.f32 %v47, %v86
    %v88 = vrot.slane %v87, 2
    %v89 = vadd.f32 %v87, %v88
    %v90 = vrot.slane %v89, 1
    %v91 = vadd.f32 %v89, %v90
    %v92 = vrot.slane %v48, 4
    %v93 = vadd.f32 %v48, %v92
    %v94 = vrot.slane %v93, 2
    %v95 = vadd.f32 %v93, %v94
    %v96 = vrot.slane %v95, 1
    %v97 = vadd.f32 %v95, %v96
    %v106 = vcombine.low %v55, %v61
    %v107 = vcombine.low %v67, %v73
    %v109 = vunpack.c.l.s4 1983009808
    %v110 = vunpack.c.0.s8 %v109
    %v111 = vlaneseq
    %v112 = vshrl.u32 %v111, 7
    %v113 = vsub.s32 %v110, %v112
    %v114 = vrot.slane %v106, %v113
    %v116 = vunpack.c.l.s4 1983009808
    %v117 = vunpack.c.0.s8 %v116
    %v118 = vlaneseq
    %v119 = vshrl.u32 %v118, 7
    %v120 = vsub.s32 %v117, %v119
    %v121 = vrot.slane %v107, %v120
    %v122 = vcombine.low %v114, %v121
    %v123 = vcombine.low %v79, %v85
    %v124 = vcombine.low %v91, %v97
    %v126 = vunpack.c.l.s4 1983009808
    %v127 = vunpack.c.0.s8 %v126
    %v128 = vlaneseq
    %v129 = vshrl.u32 %v128, 7
    %v130 = vsub.s32 %v127, %v129
    %v131 = vrot.slane %v123, %v130
    %v133 = vunpack.c.l.s4 1983009808
    %v134 = vunpack.c.0.s8 %v133
    %v135 = vlaneseq
    %v136 = vshrl.u32 %v135, 7
    %v137 = vsub.s32 %v134, %v136
    %v138 = vrot.slane %v124, %v137
    %v139 = vcombine.low %v131, %v138
    %vm140 = vcmask 1044484
    %v141 = vsel %vm140, %v122, %v122
    %vm142 = vcmask 1046534
    %v143 = vsel %vm142, %v122, %v141
    %v144 = vrot.slane %v139, 7
    %vm145 = vcmask 1041409
    %v146 = vsel %vm145, %v144, %v143
    %vm147 = vcmask 1043459
    %v148 = vsel %vm147, %v144, %v146
    %vm149 = vcmask 1045509
    %v150 = vsel %vm149, %v144, %v148
    %vm151 = vcmask 1047559
    %v152 = vsel %vm151, %v144, %v150
    %v154 = vadd.f32 %v49, %v152
    %155 = vst [vmem:[#allocation5] sm:$0xff] %v154
    // Predicated region
    $region14: #{tpu_custom_call.1} parent=1 // pred_check
      _
    $region15: #{tpu_custom_call.1} parent=1 // pred_check_branch
      %157 = sbr.rel (0) target = $region17
    $region16: #{tpu_custom_call.1} parent=1 // pred_region
      %s159 = ssub.s32 128, 128
      %160 = vsyncadd [#allocation4], %s159
      %s162 = sshll.u32 [#allocation5], 4
      %s163 = int_to_ptr.vmem [resolvable:$true] %s162
      %165 = dma.vmem_to_hbm [thread:$0]  %s163, 128, %s1, [#allocation4]
    $region17: #{tpu_custom_call.1} parent=1 // pred_fallthru
      _
    // Predicated region
    $region18: #{tpu_custom_call.1} parent=1 // pred_check
      _
    $region19: #{tpu_custom_call.1} parent=1 // pred_check_branch
      %167 = sbr.rel (0) target = $region21
    $region20: #{tpu_custom_call.1} parent=1 // pred_region
      %168 = dma.done [#allocation4], 128
    $region21: #{tpu_custom_call.1} parent=1 // pred_fallthru
      _
    %169 = vsyncpa [#allocation3], 1
    %170 = vsyncpa [#allocation4], 1

</llo_original>
